<compile_context>
chip_gen: v7x
topology: tpu7x:2x2x1
jax: 0.10.0
libtpu: 0.0.40
codegen_flags: <defaults>
</compile_context>

<pallas_src>
import jax
import jax.numpy as jnp
import numpy as np
from jax.experimental import pallas as pl
from jax.experimental.pallas import tpu as pltpu


def _round_up(x, m):
    return (x + m - 1) // m * m


def _tpu_generation():
    """Returns (lane_multiple, vmem_scoped_budget_bytes, multi_core)."""
    try:
        kind = jax.devices()[0].device_kind.lower()
    except Exception:
        kind = ""
    if "v5 lite" in kind or "v5e" in kind or "v5lite" in kind:
        # v5e: 128x128 MXU, 128 MiB VMEM, 1 TensorCore.
        return 128, 100 * 1024 * 1024, False
    if "v6" in kind:
        # v6e: 256x256 MXU, 128 MiB VMEM, 1 TensorCore.
        return 256, 100 * 1024 * 1024, False
    if "7" in kind:
        # v7x: 256x256 MXU, 64 MiB VMEM per TC (leave headroom), 2 TensorCores.
        return 256, 48 * 1024 * 1024, True
    # Unknown generation: conservative defaults.
    return 128, 64 * 1024 * 1024, False


def _ffn_kernel_single(x_ref, w1_ref, b1_ref, w2_ref, b2_ref, o_ref):
    """Single reduction step: weights are VMEM-resident, write output directly."""
    h = jnp.dot(x_ref[...], w1_ref[...],
                preferred_element_type=jnp.float32) + b1_ref[...]
    h = jnp.maximum(h, 0.0)
    out = jnp.dot(h.astype(w2_ref.dtype), w2_ref[...],
                  preferred_element_type=jnp.float32) + b2_ref[...]
    o_ref[...] = out.astype(o_ref.dtype)


def _ffn_kernel_acc(x_ref, w1_ref, b1_ref, w2_ref, b2_ref, o_ref, acc_ref):
    """Chunked d_ff reduction with an f32 VMEM accumulator."""
    fi = pl.program_id(1)

    @pl.when(fi == 0)
    def _init():
        acc_ref[...] = jnp.zeros_like(acc_ref)

    h = jnp.dot(x_ref[...], w1_ref[...],
                preferred_element_type=jnp.float32) + b1_ref[...]
    h = jnp.maximum(h, 0.0)
    acc_ref[...] += jnp.dot(h.astype(w2_ref.dtype), w2_ref[...],
                            preferred_element_type=jnp.float32)

    @pl.when(fi == pl.num_programs(1) - 1)
    def _finalize():
        o_ref[...] = (acc_ref[...] + b2_ref[...]).astype(o_ref.dtype)


def feed_forward(x, params):
    """x: (..., d_model). params: w1 (d_model,d_ff), b1 (d_ff,), w2 (d_ff,d_model), b2 (d_model,)."""
    w1, b1, w2, b2 = params["w1"], params["b1"], params["w2"], params["b2"]
    d_model, d_ff = w1.shape
    orig_shape = x.shape

    x2 = x.reshape(-1, d_model)
    n = x2.shape[0]

    lane, vmem_budget, multi_core = _tpu_generation()
    usable = int(vmem_budget * 0.85)

    x_bytes = jnp.dtype(x.dtype).itemsize
    w_bytes = jnp.dtype(w1.dtype).itemsize
    sub = max(8, 32 // max(x_bytes, 1))        # sublane multiple (8 f32 / 16 bf16)

    dp = max(_round_up(d_model, lane), lane)   # padded d_model (lane-dense)
    fp = max(_round_up(d_ff, lane), lane)      # padded d_ff
    n8 = max(_round_up(n, sub), sub)           # rows padded to sublane multiple

    def est_vmem(tm, tf, single_step):
        """Exact dtype-aware VMEM estimate for one pipelined grid step."""
        t = 0
        t += 2 * tm * dp * x_bytes             # x blocks (double-buffered)
        t += 2 * dp * tf * w_bytes             # W1 blocks
        t += 2 * sub * tf * w_bytes            # b1 blocks (sublane-padded)
        t += 2 * tf * dp * w_bytes             # W2 blocks
        t += 2 * sub * dp * w_bytes            # b2 blocks
        t += 2 * tm * dp * x_bytes             # output blocks
        t += tm * tf * 4                       # hidden activation (f32)
        t += tm * dp * 4                       # second matmul f32 result
        if not single_step:
            t += tm * dp * 4                   # accumulator scratch
        return t

    def pick_tm(tf, single_step):
        tm = None
        for cand in (1024, 512, 256, 128, 64, 32, 16, 8):
            if cand % sub:
                continue
            if est_vmem(cand, tf, single_step) <= usable:
                tm = cand
                break
        if tm is None:
            return None
        if n8 <= tm:
            if multi_core and n8 >= 2 * sub:
                # v7x: keep >=2 tiles on the "parallel" axis so both TCs work.
                tm = _round_up((n8 + 1) // 2, sub)
            else:
                tm = n8
        return tm

    # Plan A: weights fully VMEM-resident, single reduction step, no scratch.
    tm = pick_tm(fp, True)
    if tm is not None:
        tf, single_step = fp, True
    else:
        # Plan B: chunk d_ff; size chunks to minimize zero-padding waste.
        nch = -(-fp // 512)
        tf = max(_round_up(-(-fp // nch), lane), lane)
        fp = nch * tf
        tm = pick_tm(tf, False)
        if tm is None:
            tm = sub  # last resort: smallest legal tile
        single_step = False

    n_pad = _round_up(n8, tm)

    def pad2(a, r, c):
        if a.shape == (r, c):
            return a
        return jnp.pad(a, ((0, r - a.shape[0]), (0, c - a.shape[1])))

    xp = pad2(x2, n_pad, dp)
    w1p = pad2(w1, dp, fp)
    b1p = pad2(b1.reshape(1, -1), 1, fp)
    w2p = pad2(w2, fp, dp)
    b2p = pad2(b2.reshape(1, -1), 1, dp)

    if single_step:
        grid = (n_pad // tm,)
        in_specs = [
            pl.BlockSpec((tm, dp), lambda i: (i, 0)),   # x rows
            pl.BlockSpec((dp, fp), lambda i: (0, 0)),   # W1 (resident)
            pl.BlockSpec((1, fp), lambda i: (0, 0)),    # b1 (resident)
            pl.BlockSpec((fp, dp), lambda i: (0, 0)),   # W2 (resident)
            pl.BlockSpec((1, dp), lambda i: (0, 0)),    # b2 (resident)
        ]
        out_specs = pl.BlockSpec((tm, dp), lambda i: (i, 0))
        scratch = []
        kernel = _ffn_kernel_single
        dims = ("parallel",)
    else:
        grid = (n_pad // tm, fp // tf)
        in_specs = [
            pl.BlockSpec((tm, dp), lambda i, j: (i, 0)),   # x rows
            pl.BlockSpec((dp, tf), lambda i, j: (0, j)),   # W1 chunk
            pl.BlockSpec((1, tf), lambda i, j: (0, j)),    # b1 chunk
            pl.BlockSpec((tf, dp), lambda i, j: (j, 0)),   # W2 chunk
            pl.BlockSpec((1, dp), lambda i, j: (0, 0)),    # b2
        ]
        out_specs = pl.BlockSpec((tm, dp), lambda i, j: (i, 0))
        scratch = [pltpu.VMEM((tm, dp), jnp.float32)]
        kernel = _ffn_kernel_acc
        dims = ("parallel", "arbitrary")

    out = pl.pallas_call(
        kernel,
        out_shape=jax.ShapeDtypeStruct((n_pad, dp), x.dtype),
        grid_spec=pltpu.PrefetchScalarGridSpec(
            num_scalar_prefetch=0,
            grid=grid,
            in_specs=in_specs,
            out_specs=out_specs,
            scratch_shapes=scratch,
        ),
        compiler_params=pltpu.CompilerParams(
            dimension_semantics=dims,
            vmem_limit_bytes=int(vmem_budget),
        ),
    )(xp, w1p, b1p, w2p, b2p)

    out = out[:n, :d_model]
    return out.reshape(orig_shape)


def _reference(x, params):
    """Pure-JAX reference mirroring the PyTorch forward."""
    h = jnp.maximum(x @ params["w1"] + params["b1"], 0.0)
    return h @ params["w2"] + params["b2"]


if __name__ == "__main__":
    # Small shapes consistent with the module: batch=2, seq=8, d_model=32, d_ff=64.
    B, S, d_model, d_ff = 2, 8, 32, 64

    key = jax.random.PRNGKey(0)
    keys = jax.random.split(key, 5)
    bound1 = 1.0 / np.sqrt(d_model)
    bound2 = 1.0 / np.sqrt(d_ff)

    params = {
        # Stored as [in, out]; equivalent to nn.Linear weight transposed.
        "w1": jax.random.uniform(keys[0], (d_model, d_ff), jnp.float32, -bound1, bound1),
        "b1": jax.random.uniform(keys[1], (d_ff,), jnp.float32, -bound1, bound1),
        "w2": jax.random.uniform(keys[2], (d_ff, d_model), jnp.float32, -bound2, bound2),
        "b2": jax.random.uniform(keys[3], (d_model,), jnp.float32, -bound2, bound2),
    }

    x = jax.random.normal(keys[4], (B, S, d_model), jnp.float32)

    out = jax.block_until_ready(feed_forward(x, params))
    ref = jax.block_until_ready(_reference(x, params))
    np.testing.assert_allclose(np.asarray(out), np.asarray(ref), rtol=1e-5, atol=1e-5)

    print("KERNEL_OK")
</pallas_src>

<mosaic_0001>
module attributes {stable_mosaic.version = 11 : i64} {
  func.func @_ffn_kernel_single(%arg0: i32, %arg1: memref<16x128xf32, #tpu.memory_space<vmem>>, %arg2: memref<128x128xf32, #tpu.memory_space<vmem>>, %arg3: memref<1x128xf32, #tpu.memory_space<vmem>>, %arg4: memref<128x128xf32, #tpu.memory_space<vmem>>, %arg5: memref<1x128xf32, #tpu.memory_space<vmem>>, %arg6: memref<16x128xf32, #tpu.memory_space<vmem>>) attributes {dimension_semantics = [#tpu.dimension_semantics<parallel>], iteration_bounds = array<i64: 1>, scalar_prefetch = 0 : i64, scratch_operands = 0 : i64, tpu.core_type = #tpu.core_type<tc>, window_params = [{transform_indices = @transform_0, window_bounds = array<i64: 16, 128>}, {pipeline_mode = #tpu.pipeline_mode<synchronous>, transform_indices = @transform_1, window_bounds = array<i64: 128, 128>}, {pipeline_mode = #tpu.pipeline_mode<synchronous>, transform_indices = @transform_2, window_bounds = array<i64: 1, 128>}, {pipeline_mode = #tpu.pipeline_mode<synchronous>, transform_indices = @transform_3, window_bounds = array<i64: 128, 128>}, {pipeline_mode = #tpu.pipeline_mode<synchronous>, transform_indices = @transform_4, window_bounds = array<i64: 1, 128>}, {transform_indices = @transform_5, window_bounds = array<i64: 16, 128>}]} {
    %c0 = arith.constant 0 : index
    %c0_0 = arith.constant 0 : index
    %0 = vector.load %arg1[%c0, %c0_0] : memref<16x128xf32, #tpu.memory_space<vmem>>, vector<16x128xf32>
    %c0_1 = arith.constant 0 : index
    %c0_2 = arith.constant 0 : index
    %1 = vector.load %arg2[%c0_1, %c0_2] : memref<128x128xf32, #tpu.memory_space<vmem>>, vector<128x128xf32>
    %cst = arith.constant dense<0.000000e+00> : vector<16x128xf32>
    %2 = tpu.matmul %0, %1, %cst {dimension_numbers = #tpu.dot_dimension_numbers<[1], [0], [0], [1], [0, 0, 1, 1], [], []>} : vector<16x128xf32>, vector<128x128xf32>, vector<16x128xf32> -> vector<16x128xf32>
    %c0_3 = arith.constant 0 : index
    %c0_4 = arith.constant 0 : index
    %3 = vector.load %arg3[%c0_3, %c0_4] : memref<1x128xf32, #tpu.memory_space<vmem>>, vector<1x128xf32>
    %4 = vector.broadcast %3 : vector<1x128xf32> to vector<16x128xf32>
    %5 = arith.addf %2, %4 : vector<16x128xf32>
    %cst_5 = arith.constant 0.000000e+00 : f32
    %6 = vector.broadcast %cst_5 : f32 to vector<16x128xf32>
    %7 = arith.maximumf %5, %6 : vector<16x128xf32>
    %c0_6 = arith.constant 0 : index
    %c0_7 = arith.constant 0 : index
    %8 = vector.load %arg4[%c0_6, %c0_7] : memref<128x128xf32, #tpu.memory_space<vmem>>, vector<128x128xf32>
    %cst_8 = arith.constant dense<0.000000e+00> : vector<16x128xf32>
    %9 = tpu.matmul %7, %8, %cst_8 {dimension_numbers = #tpu.dot_dimension_numbers<[1], [0], [0], [1], [0, 0, 1, 1], [], []>} : vector<16x128xf32>, vector<128x128xf32>, vector<16x128xf32> -> vector<16x128xf32>
    %c0_9 = arith.constant 0 : index
    %c0_10 = arith.constant 0 : index
    %10 = vector.load %arg5[%c0_9, %c0_10] : memref<1x128xf32, #tpu.memory_space<vmem>>, vector<1x128xf32>
    %11 = vector.broadcast %10 : vector<1x128xf32> to vector<16x128xf32>
    %12 = arith.addf %9, %11 : vector<16x128xf32>
    %c0_11 = arith.constant 0 : index
    %c0_12 = arith.constant 0 : index
    %13 = vector.load %arg6[%c0_11, %c0_12] : memref<16x128xf32, #tpu.memory_space<vmem>>, vector<16x128xf32>
    tpu.vector_store %arg6[%c0_11, %c0_12], %12 {strides = array<i32>} : memref<16x128xf32, #tpu.memory_space<vmem>>, vector<16x128xf32>,
    return
  }
  func.func @transform_0(%arg0: i32) -> (i32, i32) {
    %c0_i32 = arith.constant 0 : i32
    %c0_i32_0 = arith.constant 0 : i32
    return %arg0, %c0_i32 : i32, i32
  }
  func.func @transform_1(%arg0: i32) -> (i32, i32) {
    %c0_i32 = arith.constant 0 : i32
    %c0_i32_0 = arith.constant 0 : i32
    %c0_i32_1 = arith.constant 0 : i32
    return %c0_i32, %c0_i32_0 : i32, i32
  }
  func.func @transform_2(%arg0: i32) -> (i32, i32) {
    %c0_i32 = arith.constant 0 : i32
    %c0_i32_0 = arith.constant 0 : i32
    %c0_i32_1 = arith.constant 0 : i32
    return %c0_i32, %c0_i32_0 : i32, i32
  }
  func.func @transform_3(%arg0: i32) -> (i32, i32) {
    %c0_i32 = arith.constant 0 : i32
    %c0_i32_0 = arith.constant 0 : i32
    %c0_i32_1 = arith.constant 0 : i32
    return %c0_i32, %c0_i32_0 : i32, i32
  }
  func.func @transform_4(%arg0: i32) -> (i32, i32) {
    %c0_i32 = arith.constant 0 : i32
    %c0_i32_0 = arith.constant 0 : i32
    %c0_i32_1 = arith.constant 0 : i32
    return %c0_i32, %c0_i32_0 : i32, i32
  }
  func.func @transform_5(%arg0: i32) -> (i32, i32) {
    %c0_i32 = arith.constant 0 : i32
    %c0_i32_0 = arith.constant 0 : i32
    return %arg0, %c0_i32 : i32, i32
  }
}

</mosaic_0001>

<llo_original>
// kernel: tpu_custom_call.1
$region0: #{tpu_custom_call.1}
  #allocation0 [shape = 'u32[]', space=smem, size = 0x4, offset = 0x4, fixed_abs, tag = 'smem constant byte address 0x4 - core index']
  #allocation1 [shape = 'u32[144,128]{1,0:T(1,128)}', space=vmem, size = 0x12000, scoped, tag = 'internal scratch']
  %s0 = inlined_call_operand.hbm [shape: f32[16,128], index: 0, kind: input, shape index: {}]
  %s1 = inlined_call_operand.hbm [shape: f32[128,128], index: 1, kind: input, shape index: {}]
  %s2 = inlined_call_operand.hbm [shape: f32[1,128], index: 2, kind: input, shape index: {}]
  %s3 = inlined_call_operand.hbm [shape: f32[128,128], index: 3, kind: input, shape index: {}]
  %s4 = inlined_call_operand.hbm [shape: f32[1,128], index: 4, kind: input, shape index: {}]
  %s5 = inlined_call_operand.hbm [shape: f32[16,128], index: 5, kind: output, shape index: {}]
  %s6 = sld [smem:[#allocation0]]
  $region50: #{tpu_custom_call.1} parent=0
    _
  %s8 = ssub.s32 1, %s6
  %s9 = scalar_select 0, %s8, %s6
  $region1: #{tpu_custom_call.1} parent=0
    #allocation2 [shape = 'u8[8192]{0}', space=vmem, size = 0x2000, scoped, tag = 'input window, operand 0, single buffered']
    #allocation3 [shape = 's32[1]{0}', space=sflag, size = 0x4, scoped, tag = 'scoped memory for tpu_custom_call.1']
    #allocation4 [shape = 's32[1]{0}', space=sflag, size = 0x4, scoped, tag = 'scoped memory for tpu_custom_call.1']
    #allocation5 [shape = 'u8[65536]{0}', space=vmem, size = 0x10000, scoped, tag = 'input window, operand 1, single buffered']
    #allocation6 [shape = 's32[1]{0}', space=sflag, size = 0x4, scoped, tag = 'scoped memory for tpu_custom_call.1']
    #allocation7 [shape = 'u8[512]{0}', space=vmem, size = 0x400, scoped, tag = 'input window, operand 2, single buffered']
    #allocation8 [shape = 'u8[65536]{0}', space=vmem, size = 0x10000, scoped, tag = 'input window, operand 3, single buffered']
    #allocation9 [shape = 's32[1]{0}', space=sflag, size = 0x4, scoped, tag = 'scoped memory for tpu_custom_call.1']
    #allocation10 [shape = 'u8[512]{0}', space=vmem, size = 0x400, scoped, tag = 'input window, operand 4, single buffered']
    #allocation11 [shape = 'u8[8192]{0}', space=vmem, size = 0x2000, scoped, tag = 'output window, operand 0, single buffered']
    %10 = vsyncpa [#allocation3], 0
    %11 = vsyncpa [#allocation6], 0
    %12 = vsyncpa [#allocation9], 0
    %13 = vsyncpa [#allocation4], 0
    // Predicated region
    $region2: #{tpu_custom_call.1} parent=1 // pred_check
      _
    $region3: #{tpu_custom_call.1} parent=1 // pred_check_branch
      %15 = sbr.rel (0) target = $region5
    $region4: #{tpu_custom_call.1} parent=1 // pred_region
      %s17 = ssub.s32 256, 256
      %18 = vsyncadd [#allocation3], %s17
      %s19 = sshll.u32 [#allocation2], 4
      %s20 = int_to_ptr.vmem [resolvable:$true] %s19
      %25 = dma.hbm_to_vmem [thread:$0]  %s0, 256, %s20, [#allocation3], 128, 128, 8
    $region5: #{tpu_custom_call.1} parent=1 // pred_fallthru
      _
    // Predicated region
    $region6: #{tpu_custom_call.1} parent=1 // pred_check
      _
    $region7: #{tpu_custom_call.1} parent=1 // pred_check_branch
      %27 = sbr.rel (0) target = $region9
    $region8: #{tpu_custom_call.1} parent=1 // pred_region
      %s29 = ssub.s32 2048, 2048
      %30 = vsyncadd [#allocation6], %s29
      %s31 = sshll.u32 [#allocation5], 4
      %s32 = int_to_ptr.vmem [resolvable:$true] %s31
      %37 = dma.hbm_to_vmem [thread:$0]  %s1, 2048, %s32, [#allocation6], 128, 128, 8
    $region9: #{tpu_custom_call.1} parent=1 // pred_fallthru
      _
    // Predicated region
    $region10: #{tpu_custom_call.1} parent=1 // pred_check
      _
    $region11: #{tpu_custom_call.1} parent=1 // pred_check_branch
      %39 = sbr.rel (0) target = $region13
    $region12: #{tpu_custom_call.1} parent=1 // pred_region
      %s41 = ssub.s32 16, 16
      %42 = vsyncadd [#allocation6], %s41
      %s44 = sshll.u32 [#allocation7], 4
      %s45 = int_to_ptr.vmem [resolvable:$true] %s44
      %47 = dma.hbm_to_vmem [thread:$0]  %s2, 16, %s45, [#allocation6]
    $region13: #{tpu_custom_call.1} parent=1 // pred_fallthru
      _
    // Predicated region
    $region14: #{tpu_custom_call.1} parent=1 // pred_check
      _
    $region15: #{tpu_custom_call.1} parent=1 // pred_check_branch
      %49 = sbr.rel (0) target = $region17
    $region16: #{tpu_custom_call.1} parent=1 // pred_region
      %s51 = ssub.s32 2048, 2048
      %52 = vsyncadd [#allocation9], %s51
      %s53 = sshll.u32 [#allocation8], 4
      %s54 = int_to_ptr.vmem [resolvable:$true] %s53
      %59 = dma.hbm_to_vmem [thread:$0]  %s3, 2048, %s54, [#allocation9], 128, 128, 8
    $region17: #{tpu_custom_call.1} parent=1 // pred_fallthru
      _
    // Predicated region
    $region18: #{tpu_custom_call.1} parent=1 // pred_check
      _
    $region19: #{tpu_custom_call.1} parent=1 // pred_check_branch
      %61 = sbr.rel (0) target = $region21
    $region20: #{tpu_custom_call.1} parent=1 // pred_region
      %s63 = ssub.s32 16, 16
      %64 = vsyncadd [#allocation9], %s63
      %s66 = sshll.u32 [#allocation10], 4
      %s67 = int_to_ptr.vmem [resolvable:$true] %s66
      %69 = dma.hbm_to_vmem [thread:$0]  %s4, 16, %s67, [#allocation9]
    $region21: #{tpu_custom_call.1} parent=1 // pred_fallthru
      _
    // Predicated region
    $region22: #{tpu_custom_call.1} parent=1 // pred_check
      _
    $region23: #{tpu_custom_call.1} parent=1 // pred_check_branch
      %71 = sbr.rel (0) target = $region25
    $region24: #{tpu_custom_call.1} parent=1 // pred_region
      %72 = dma.done [#allocation3], 256
    $region25: #{tpu_custom_call.1} parent=1 // pred_fallthru
      _
    // Predicated region
    $region26: #{tpu_custom_call.1} parent=1 // pred_check
      _
    $region27: #{tpu_custom_call.1} parent=1 // pred_check_branch
      %74 = sbr.rel (0) target = $region29
    $region28: #{tpu_custom_call.1} parent=1 // pred_region
      %75 = dma.done [#allocation6], 2048
    $region29: #{tpu_custom_call.1} parent=1 // pred_fallthru
      _
    // Predicated region
    $region30: #{tpu_custom_call.1} parent=1 // pred_check
      _
    $region31: #{tpu_custom_call.1} parent=1 // pred_check_branch
      %77 = sbr.rel (0) target = $region33
    $region32: #{tpu_custom_call.1} parent=1 // pred_region
      %78 = dma.done [#allocation6], 16
    $region33: #{tpu_custom_call.1} parent=1 // pred_fallthru
      _
    // Predicated region
    $region34: #{tpu_custom_call.1} parent=1 // pred_check
      _
    $region35: #{tpu_custom_call.1} parent=1 // pred_check_branch
      %80 = sbr.rel (0) target = $region37
    $region36: #{tpu_custom_call.1} parent=1 // pred_region
      %81 = dma.done [#allocation9], 2048
    $region37: #{tpu_custom_call.1} parent=1 // pred_fallthru
      _
    // Predicated region
    $region38: #{tpu_custom_call.1} parent=1 // pred_check
      _
    $region39: #{tpu_custom_call.1} parent=1 // pred_check_branch
      %83 = sbr.rel (0) target = $region41
    $region40: #{tpu_custom_call.1} parent=1 // pred_region
      %84 = dma.done [#allocation9], 16
    $region41: #{tpu_custom_call.1} parent=1 // pred_fallthru
      _
    %v85 = vld [vmem:[#allocation2] sm:$0xff]
    %v86 = vld [vmem:[#allocation2 + $0x8] sm:$0xff]
    %v87 = vld [vmem:[#allocation5] sm:$0xff]
    %v88 = vld [vmem:[#allocation5 + $0x8] sm:$0xff]
    %v89 = vld [vmem:[#allocation5 + $0x10] sm:$0xff]
    %v90 = vld [vmem:[#allocation5 + $0x18] sm:$0xff]
    %v91 = vld [vmem:[#allocation5 + $0x20] sm:$0xff]
    %v92 = vld [vmem:[#allocation5 + $0x28] sm:$0xff]
    %v93 = vld [vmem:[#allocation5 + $0x30] sm:$0xff]
    %v94 = vld [vmem:[#allocation5 + $0x38] sm:$0xff]
    %v95 = vld [vmem:[#allocation5 + $0x40] sm:$0xff]
    %v96 = vld [vmem:[#allocation5 + $0x48] sm:$0xff]
    %v97 = vld [vmem:[#allocation5 + $0x50] sm:$0xff]
    %v98 = vld [vmem:[#allocation5 + $0x58] sm:$0xff]
    %v99 = vld [vmem:[#allocation5 + $0x60] sm:$0xff]
    %v100 = vld [vmem:[#allocation5 + $0x68] sm:$0xff]
    %v101 = vld [vmem:[#allocation5 + $0x70] sm:$0xff]
    %v102 = vld [vmem:[#allocation5 + $0x78] sm:$0xff]
    %v103 = vld [vmem:[#allocation7] sm:$0x1]
    %v105 = vlaneseq
    %v106 = vshrl.u32 %v105, 7
    %v107 = vsub.s32 0, %v106
    %v108 = vrot.slane %v103, %v107
    %110 = vmatprep.subr.mxu0 0.0
    %111 = vmatpush1.msra.mxu0 %v87
    %112 = vmatprep.subr.mxu0 0.0
    %113 = vmatpush1.msra.mxu0 %v88
    %114 = vmatprep.subr.mxu0 0.0
    %115 = vmatpush1.msra.mxu0 %v89
    %116 = vmatprep.subr.mxu0 0.0
    %117 = vmatpush1.msra.mxu0 %v90
    %118 = vmatprep.subr.mxu0 0.0
    %119 = vmatpush1.msra.mxu0 %v91
    %120 = vmatprep.subr.mxu0 0.0
    %121 = vmatpush1.msra.mxu0 %v92
    %122 = vmatprep.subr.mxu0 0.0
    %123 = vmatpush1.msra.mxu0 %v93
    %124 = vmatprep.subr.mxu0 0.0
    %125 = vmatpush1.msra.mxu0 %v94
    %126 = vmatprep.subr.mxu0 0.0
    %127 = vmatpush1.msra.mxu0 %v95
    %128 = vmatprep.subr.mxu0 0.0
    %129 = vmatpush1.msra.mxu0 %v96
    %130 = vmatprep.subr.mxu0 0.0
    %131 = vmatpush1.msra.mxu0 %v97
    %132 = vmatprep.subr.mxu0 0.0
    %133 = vmatpush1.msra.mxu0 %v98
    %134 = vmatprep.subr.mxu0 0.0
    %135 = vmatpush1.msra.mxu0 %v99
    %136 = vmatprep.subr.mxu0 0.0
    %137 = vmatpush1.msra.mxu0 %v100
    %138 = vmatprep.subr.mxu0 0.0
    %139 = vmatpush1.msra.mxu0 %v101
    %140 = vmatprep.subr.mxu0 0.0
    %141 = vmatpush1.msra.mxu0 %v102
    %142 = vmatprep.subr.mxu0 0.0
    %143 = vmatpush1.msra.mxu0 0.0
    %144 = vmatprep.subr.mxu0 0.0
    %145 = vmatpush1.msra.mxu0 0.0
    %146 = vmatprep.subr.mxu0 0.0
    %147 = vmatpush1.msra.mxu0 0.0
    %148 = vmatprep.subr.mxu0 0.0
    %149 = vmatpush1.msra.mxu0 0.0
    %150 = vmatprep.subr.mxu0 0.0
    %151 = vmatpush1.msra.mxu0 0.0
    %152 = vmatprep.subr.mxu0 0.0
    %153 = vmatpush1.msra.mxu0 0.0
    %154 = vmatprep.subr.mxu0 0.0
    %155 = vmatpush1.msra.mxu0 0.0
    %156 = vmatprep.subr.mxu0 0.0
    %157 = vmatpush1.msra.mxu0 0.0
    %158 = vmatprep.subr.mxu0 0.0
    %159 = vmatpush1.msra.mxu0 0.0
    %160 = vmatprep.subr.mxu0 0.0
    %161 = vmatpush1.msra.mxu0 0.0
    %162 = vmatprep.subr.mxu0 0.0
    %163 = vmatpush1.msra.mxu0 0.0
    %164 = vmatprep.subr.mxu0 0.0
    %165 = vmatpush1.msra.mxu0 0.0
    %166 = vmatprep.subr.mxu0 0.0
    %167 = vmatpush1.msra.mxu0 0.0
    %168 = vmatprep.subr.mxu0 0.0
    %169 = vmatpush1.msra.mxu0 0.0
    %170 = vmatprep.subr.mxu0 0.0
    %171 = vmatpush1.msra.mxu0 0.0
    %172 = vmatprep.subr.mxu0 0.0
    %173 = vmatpush1.msra.mxu0 0.0
    %174 = vmatprep.mubr.f32.mxu0 0.0
    %175 = vmatmul.mubr.f32.gmra.mrb[0].mxu0 %v85
    %v176 = vpop.f32.mrb[0].mxu0
    %v177 = vadd.f32 %v108, %v176
    %v178 = vpop.f32.mrb[0].mxu0
    %179 = vmatprep.mubr.f32.mxu0 0.0
    %180 = vmatmul.mubr.f32.gmra.mrb[0].mxu0 %v86
    %v181 = vpop.f32.mrb[0].mxu0
    %v182 = vadd.f32 %v108, %v181
    %v183 = vpop.f32.mrb[0].mxu0
    %184 = vdwg.mxu0
    %v185 = vmax.f32 %v177, 0.0
    %v186 = vmax.f32 %v182, 0.0
    %v187 = vld [vmem:[#allocation8] sm:$0xff]
    %v188 = vld [vmem:[#allocation8 + $0x8] sm:$0xff]
    %v189 = vld [vmem:[#allocation8 + $0x10] sm:$0xff]
    %v190 = vld [vmem:[#allocation8 + $0x18] sm:$0xff]
    %v191 = vld [vmem:[#allocation8 + $0x20] sm:$0xff]
    %v192 = vld [vmem:[#allocation8 + $0x28] sm:$0xff]
    %v193 = vld [vmem:[#allocation8 + $0x30] sm:$0xff]
    %v194 = vld [vmem:[#allocation8 + $0x38] sm:$0xff]
    %v195 = vld [vmem:[#allocation8 + $0x40] sm:$0xff]
    %v196 = vld [vmem:[#allocation8 + $0x48] sm:$0xff]
    %v197 = vld [vmem:[#allocation8 + $0x50] sm:$0xff]
    %v198 = vld [vmem:[#allocation8 + $0x58] sm:$0xff]
    %v199 = vld [vmem:[#allocation8 + $0x60] sm:$0xff]
    %v200 = vld [vmem:[#allocation8 + $0x68] sm:$0xff]
    %v201 = vld [vmem:[#allocation8 + $0x70] sm:$0xff]
    %v202 = vld [vmem:[#allocation8 + $0x78] sm:$0xff]
    %v203 = vld [vmem:[#allocation10] sm:$0x1]
    %v205 = vlaneseq
    %v206 = vshrl.u32 %v205, 7
    %v207 = vsub.s32 0, %v206
    %v208 = vrot.slane %v203, %v207
    %210 = vmatprep.subr.mxu0 0.0
    %211 = vmatpush1.msra.mxu0 %v187
    %212 = vmatprep.subr.mxu0 0.0
    %213 = vmatpush1.msra.mxu0 %v188
    %214 = vmatprep.subr.mxu0 0.0
    %215 = vmatpush1.msra.mxu0 %v189
    %216 = vmatprep.subr.mxu0 0.0
    %217 = vmatpush1.msra.mxu0 %v190
    %218 = vmatprep.subr.mxu0 0.0
    %219 = vmatpush1.msra.mxu0 %v191
    %220 = vmatprep.subr.mxu0 0.0
    %221 = vmatpush1.msra.mxu0 %v192
    %222 = vmatprep.subr.mxu0 0.0
    %223 = vmatpush1.msra.mxu0 %v193
    %224 = vmatprep.subr.mxu0 0.0
    %225 = vmatpush1.msra.mxu0 %v194
    %226 = vmatprep.subr.mxu0 0.0
    %227 = vmatpush1.msra.mxu0 %v195
    %228 = vmatprep.subr.mxu0 0.0
    %229 = vmatpush1.msra.mxu0 %v196
    %230 = vmatprep.subr.mxu0 0.0
    %231 = vmatpush1.msra.mxu0 %v197
    %232 = vmatprep.subr.mxu0 0.0
    %233 = vmatpush1.msra.mxu0 %v198
    %234 = vmatprep.subr.mxu0 0.0
    %235 = vmatpush1.msra.mxu0 %v199
    %236 = vmatprep.subr.mxu0 0.0
    %237 = vmatpush1.msra.mxu0 %v200
    %238 = vmatprep.subr.mxu0 0.0
    %239 = vmatpush1.msra.mxu0 %v201
    %240 = vmatprep.subr.mxu0 0.0
    %241 = vmatpush1.msra.mxu0 %v202
    %242 = vmatprep.subr.mxu0 0.0
    %243 = vmatpush1.msra.mxu0 0.0
    %244 = vmatprep.subr.mxu0 0.0
    %245 = vmatpush1.msra.mxu0 0.0
    %246 = vmatprep.subr.mxu0 0.0
    %247 = vmatpush1.msra.mxu0 0.0
    %248 = vmatprep.subr.mxu0 0.0
    %249 = vmatpush1.msra.mxu0 0.0
    %250 = vmatprep.subr.mxu0 0.0
    %251 = vmatpush1.msra.mxu0 0.0
    %252 = vmatprep.subr.mxu0 0.0
    %253 = vmatpush1.msra.mxu0 0.0
    %254 = vmatprep.subr.mxu0 0.0
    %255 = vmatpush1.msra.mxu0 0.0
    %256 = vmatprep.subr.mxu0 0.0
    %257 = vmatpush1.msra.mxu0 0.0
    %258 = vmatprep.subr.mxu0 0.0
    %259 = vmatpush1.msra.mxu0 0.0
    %260 = vmatprep.subr.mxu0 0.0
    %261 = vmatpush1.msra.mxu0 0.0
    %262 = vmatprep.subr.mxu0 0.0
    %263 = vmatpush1.msra.mxu0 0.0
    %264 = vmatprep.subr.mxu0 0.0
    %265 = vmatpush1.msra.mxu0 0.0
    %266 = vmatprep.subr.mxu0 0.0
    %267 = vmatpush1.msra.mxu0 0.0
    %268 = vmatprep.subr.mxu0 0.0
    %269 = vmatpush1.msra.mxu0 0.0
    %270 = vmatprep.subr.mxu0 0.0
    %271 = vmatpush1.msra.mxu0 0.0
    %272 = vmatprep.subr.mxu0 0.0
    %273 = vmatpush1.msra.mxu0 0.0
    %274 = vmatprep.mubr.f32.mxu0 0.0
    %275 = vmatmul.mubr.f32.gmra.mrb[0].mxu0 %v185
    %v276 = vpop.f32.mrb[0].mxu0
    %v277 = vadd.f32 %v208, %v276
    %v278 = vpop.f32.mrb[0].mxu0
    %279 = vmatprep.mubr.f32.mxu0 0.0
    %280 = vmatmul.mubr.f32.gmra.mrb[0].mxu0 %v186
    %v281 = vpop.f32.mrb[0].mxu0
    %v282 = vadd.f32 %v208, %v281
    %v283 = vpop.f32.mrb[0].mxu0
    %284 = vdwg.mxu0
    %285 = vst [vmem:[#allocation11] sm:$0xff] %v277
    %286 = vst [vmem:[#allocation11 + $0x8] sm:$0xff] %v282
    // Predicated region
    $region42: #{tpu_custom_call.1} parent=1 // pred_check
      _
    $region43: #{tpu_custom_call.1} parent=1 // pred_check_branch
      %288 = sbr.rel (0) target = $region45
    $region44: #{tpu_custom_call.1} parent=1 // pred_region
      %s290 = ssub.s32 256, 256
      %291 = vsyncadd [#allocation4], %s290
      %s292 = sshll.u32 [#allocation11], 4
      %s293 = int_to_ptr.vmem [resolvable:$true] %s292
      %298 = dma.vmem_to_hbm [thread:$0]  %s293, 256, %s5, [#allocation4], 128, 128, 8
    $region45: #{tpu_custom_call.1} parent=1 // pred_fallthru
      _
    // Predicated region
    $region46: #{tpu_custom_call.1} parent=1 // pred_check
      _
    $region47: #{tpu_custom_call.1} parent=1 // pred_check_branch
      %300 = sbr.rel (0) target = $region49
    $region48: #{tpu_custom_call.1} parent=1 // pred_region
      %301 = dma.done [#allocation4], 256
    $region49: #{tpu_custom_call.1} parent=1 // pred_fallthru
      _
    %302 = vsyncpa [#allocation3], 1
    %303 = vsyncpa [#allocation6], 1
    %304 = vsyncpa [#allocation9], 1
    %305 = vsyncpa [#allocation4], 1

</llo_original>
